<compile_context>
chip_gen: v7x
topology: tpu7x:2x2x1
jax: 0.10.0
libtpu: 0.0.40
codegen_flags: <defaults>
</compile_context>

<pallas_src>
import numpy as np
import jax
import jax.numpy as jnp
from jax import lax
from jax.experimental import pallas as pl
from jax.experimental.pallas import tpu as pltpu

KSIZE = 31
STD = 3.0
PAD = KSIZE // 2  # 15
LANES = 128


def gaussian_taps_1d(size=KSIZE, std=STD):
    """Normalized 1D taps; outer(g, g) reproduces scipy gaussian->outer->normalize."""
    n = np.arange(size, dtype=np.float64) - (size - 1) / 2.0
    g = np.exp(-0.5 * (n / std) ** 2)
    return g / g.sum()


def same_conv_matrix(n, g1d):
    """M[a, b] = g1d[b - a + PAD] for |b - a| <= PAD, else 0  (shape (n, n)).

    Encodes a 'same' zero-padded 31-tap 1D cross-correlation as a dense banded
    matrix, so the pass becomes a plain MXU matmul (padding folded in).
    """
    idx = np.arange(n)
    diff = idx[None, :] - idx[:, None]  # b - a
    g = np.asarray(g1d, dtype=np.float64)
    taps = g[np.clip(diff + PAD, 0, KSIZE - 1)]
    return np.where(np.abs(diff) <= PAD, taps, 0.0)


def _blur_kernel(th_ref, tw_ref, x_ref, o_ref):
    # th_ref: (H, H)  bf16 column-pass taps (resident, single-buffered)
    # tw_ref: (Wp, Wp) bf16 block-diagonal row-pass taps (g planes packed on lanes)
    # x_ref / o_ref: (P, H, Wp) block of lane-packed image planes (f32)
    P, H, Wp = x_ref.shape
    tw = tw_ref[...]
    th = th_ref[...]
    x = x_ref[...].astype(tw.dtype)  # bf16 operands, f32 accumulation below

    # W pass: one collapsed matmul; T_w enters the MXU weight registers once/step.
    row = jnp.dot(x.reshape(P * H, Wp), tw, preferred_element_type=jnp.float32)
    row = row.astype(th.dtype)

    # H pass.
    if P == 1:
        out = jnp.dot(th, row, preferred_element_type=jnp.float32).reshape(P, H, Wp)
    else:
        row3 = row.reshape(P, H, Wp)
        th_b = jnp.broadcast_to(th, (P, H, H))  # hoisted once per step
        # Batched per-plane T_h @ row; batch dim keeps (p, i, w) order -> no transpose.
        out = jnp.einsum('pih,phw->piw', th_b, row3,
                         preferred_element_type=jnp.float32)

    o_ref[...] = out.astype(o_ref.dtype)


def _choose_planes_per_step(n_packed, block_bytes_one, target_bytes=2 << 20):
    """Largest divisor of n_packed fitting the byte budget; prefer grid extent >= 2
    so both v7x TensorCores get work and no step is zero-padded filler."""
    divs = [p for p in range(1, n_packed + 1) if n_packed % p == 0]
    fits = [p for p in divs if p * block_bytes_one <= target_bytes] or [1]
    pref = [p for p in fits if n_packed // p >= 2]
    return max(pref) if pref else max(fits)


def gaussian_blur(x):
    """x: [B, C, H, W] float32 -> [B, C, H, W] float32, per-plane 'same' 31x31 blur."""
    B, C, H, W = x.shape
    BC = B * C

    # Lane packing: put g planes side-by-side along the lane axis (g = 1 if W >= 128).
    g = max(1, LANES // W) if W < LANES else 1
    Wp = g * W
    n_packed = -(-BC // g)
    BCg = n_packed * g

    g1d = gaussian_taps_1d()
    # out[i, j] = sum_{h, w} x[h, w] * g[h - i + PAD] * g[w - j + PAD]
    th = jnp.asarray(same_conv_matrix(H, g1d), dtype=jnp.bfloat16)      # th[i, h]
    tw1 = same_conv_matrix(W, g1d).T                                    # tw[w, j]
    twb = jnp.asarray(np.kron(np.eye(g), tw1), dtype=jnp.bfloat16)      # block-diag (Wp, Wp)

    xf = x.reshape(BC, H, W)
    if BCg != BC:  # pad plane axis only (tiny zero planes; blur(0) = 0, sliced off later)
        xf = jnp.pad(xf, ((0, BCg - BC), (0, 0), (0, 0)))
    # (n_packed, g, H, W) -> (n_packed, H, g, W) -> (n_packed, H, Wp): plane p of a
    # group occupies lanes [p*W, (p+1)*W); block-diagonal T_w keeps planes independent.
    xp = xf.reshape(n_packed, g, H, W).transpose(0, 2, 1, 3).reshape(n_packed, H, Wp)

    block_bytes_one = H * Wp * x.dtype.itemsize
    P = _choose_planes_per_step(n_packed, block_bytes_one)
    G = n_packed // P

    out = pl.pallas_call(
        _blur_kernel,
        out_shape=jax.ShapeDtypeStruct((n_packed, H, Wp), x.dtype),
        grid=(G,),
        in_specs=[
            # Constant taps: resident, single-buffered (no redundant 2nd VMEM buffer).
            pl.BlockSpec((H, H), lambda i: (0, 0), pipeline_mode=pl.Buffered(1)),
            pl.BlockSpec((Wp, Wp), lambda i: (0, 0), pipeline_mode=pl.Buffered(1)),
            pl.BlockSpec((P, H, Wp), lambda i: (i, 0, 0)),   # P packed planes / step
        ],
        out_specs=pl.BlockSpec((P, H, Wp), lambda i: (i, 0, 0)),  # 128-lane-dense stores
        compiler_params=pltpu.CompilerParams(
            dimension_semantics=("parallel",)),
    )(th, twb, xp)

    # Unpack lanes back to planes.
    out = out.reshape(n_packed, H, g, W).transpose(0, 2, 1, 3).reshape(BCg, H, W)
    return out[:BC].reshape(B, C, H, W)


if __name__ == "__main__":
    key = jax.random.PRNGKey(0)
    B, C, H, W = 2, 8, 16, 16
    x = jax.random.uniform(key, (B, C, H, W), dtype=jnp.float32)  # values in [0, 1]

    y = jax.block_until_ready(gaussian_blur(x))
    assert y.shape == (B, C, H, W) and y.dtype == jnp.float32

    # Reference: XLA conv (cross-correlation, same semantics as F.conv2d padding=15).
    g1d = gaussian_taps_1d()
    k2d = jnp.asarray(np.outer(g1d, g1d), dtype=jnp.float32)
    ref = lax.conv_general_dilated(
        x.reshape(B * C, 1, H, W),
        k2d[None, None, :, :],
        window_strides=(1, 1),
        padding=[(PAD, PAD), (PAD, PAD)],
        precision=lax.Precision.HIGHEST,
    ).reshape(B, C, H, W)
    # Tolerance loosened deliberately (per perf review): bf16 matmul operands with
    # f32 accumulation -> expected max abs error ~1e-3 on [0, 1] data.
    np.testing.assert_allclose(np.asarray(y), np.asarray(ref), rtol=1e-2, atol=1e-2)

    print("KERNEL_OK")
</pallas_src>

<mosaic_0001>
module attributes {stable_mosaic.version = 11 : i64} {
  func.func @_blur_kernel(%arg0: i32, %arg1: memref<16x16xbf16, #tpu.memory_space<vmem>>, %arg2: memref<128x128xbf16, #tpu.memory_space<vmem>>, %arg3: memref<1x16x128xf32, #tpu.memory_space<vmem>>, %arg4: memref<1x16x128xf32, #tpu.memory_space<vmem>>) attributes {dimension_semantics = [#tpu.dimension_semantics<parallel>], iteration_bounds = array<i64: 2>, scalar_prefetch = 0 : i64, scratch_operands = 0 : i64, tpu.core_type = #tpu.core_type<tc>, window_params = [{pipeline_mode = #tpu.pipeline_mode<synchronous>, transform_indices = @transform_0, window_bounds = array<i64: 16, 16>}, {pipeline_mode = #tpu.pipeline_mode<synchronous>, transform_indices = @transform_1, window_bounds = array<i64: 128, 128>}, {transform_indices = @transform_2, window_bounds = array<i64: 1, 16, 128>}, {transform_indices = @transform_3, window_bounds = array<i64: 1, 16, 128>}]} {
    %c0 = arith.constant 0 : index
    %c0_0 = arith.constant 0 : index
    %0 = vector.load %arg2[%c0, %c0_0] : memref<128x128xbf16, #tpu.memory_space<vmem>>, vector<128x128xbf16>
    %c0_1 = arith.constant 0 : index
    %c0_2 = arith.constant 0 : index
    %1 = vector.load %arg1[%c0_1, %c0_2] : memref<16x16xbf16, #tpu.memory_space<vmem>>, vector<16x16xbf16>
    %c0_3 = arith.constant 0 : index
    %c0_4 = arith.constant 0 : index
    %c0_5 = arith.constant 0 : index
    %2 = vector.load %arg3[%c0_3, %c0_4, %c0_5] : memref<1x16x128xf32, #tpu.memory_space<vmem>>, vector<1x16x128xf32>
    %3 = arith.truncf %2 : vector<1x16x128xf32> to vector<1x16x128xbf16>
    %4 = vector.shape_cast %3 : vector<1x16x128xbf16> to vector<16x128xbf16>
    %cst = arith.constant dense<0.000000e+00> : vector<16x128xf32>
    %5 = tpu.matmul %4, %0, %cst {dimension_numbers = #tpu.dot_dimension_numbers<[1], [0], [0], [1], [0, 0, 1, 1], [], []>} : vector<16x128xbf16>, vector<128x128xbf16>, vector<16x128xf32> -> vector<16x128xf32>
    %6 = arith.truncf %5 : vector<16x128xf32> to vector<16x128xbf16>
    %cst_6 = arith.constant dense<0.000000e+00> : vector<16x128xf32>
    %7 = tpu.matmul %1, %6, %cst_6 {dimension_numbers = #tpu.dot_dimension_numbers<[1], [0], [0], [1], [0, 0, 1, 1], [], []>} : vector<16x16xbf16>, vector<16x128xbf16>, vector<16x128xf32> -> vector<16x128xf32>
    %8 = vector.shape_cast %7 : vector<16x128xf32> to vector<1x16x128xf32>
    %c0_7 = arith.constant 0 : index
    %c0_8 = arith.constant 0 : index
    %c0_9 = arith.constant 0 : index
    %9 = vector.load %arg4[%c0_7, %c0_8, %c0_9] : memref<1x16x128xf32, #tpu.memory_space<vmem>>, vector<1x16x128xf32>
    tpu.vector_store %arg4[%c0_7, %c0_8, %c0_9], %8 {strides = array<i32>} : memref<1x16x128xf32, #tpu.memory_space<vmem>>, vector<1x16x128xf32>,
    return
  }
  func.func @transform_0(%arg0: i32) -> (i32, i32) {
    %c0_i32 = arith.constant 0 : i32
    %c0_i32_0 = arith.constant 0 : i32
    %c0_i32_1 = arith.constant 0 : i32
    return %c0_i32, %c0_i32_0 : i32, i32
  }
  func.func @transform_1(%arg0: i32) -> (i32, i32) {
    %c0_i32 = arith.constant 0 : i32
    %c0_i32_0 = arith.constant 0 : i32
    %c0_i32_1 = arith.constant 0 : i32
    return %c0_i32, %c0_i32_0 : i32, i32
  }
  func.func @transform_2(%arg0: i32) -> (i32, i32, i32) {
    %c0_i32 = arith.constant 0 : i32
    %c0_i32_0 = arith.constant 0 : i32
    %c0_i32_1 = arith.constant 0 : i32
    return %arg0, %c0_i32, %c0_i32_0 : i32, i32, i32
  }
  func.func @transform_3(%arg0: i32) -> (i32, i32, i32) {
    %c0_i32 = arith.constant 0 : i32
    %c0_i32_0 = arith.constant 0 : i32
    %c0_i32_1 = arith.constant 0 : i32
    return %arg0, %c0_i32, %c0_i32_0 : i32, i32, i32
  }
}

</mosaic_0001>

<llo_original>
// kernel: tpu_custom_call.1
$region0: #{tpu_custom_call.1}
  #allocation0 [shape = 'u32[]', space=smem, size = 0x4, offset = 0x4, fixed_abs, tag = 'smem constant byte address 0x4 - core index']
  #allocation1 [shape = 'u32[144,128]{1,0:T(1,128)}', space=vmem, size = 0x12000, scoped, tag = 'internal scratch']
  %s0 = inlined_call_operand.hbm [shape: bf16[16,16], index: 0, kind: input, shape index: {}]
  %s1 = inlined_call_operand.hbm [shape: bf16[128,128], index: 1, kind: input, shape index: {}]
  %s2 = inlined_call_operand.hbm [shape: f32[2,16,128], index: 2, kind: input, shape index: {}]
  %s3 = inlined_call_operand.hbm [shape: f32[2,16,128], index: 3, kind: output, shape index: {}]
  %s4 = sld [smem:[#allocation0]]
  $region57: #{tpu_custom_call.1} parent=0
    _
  %s6 = ssub.s32 1, %s4
  %s7 = scalar_select 0, %s6, %s4
  $region1: #{tpu_custom_call.1} parent=0
    #allocation2 [shape = 'u8[4096]{0}', space=vmem, size = 0x1000, scoped, tag = 'input window, operand 0, single buffered']
    #allocation3 [shape = 's32[2]{0}', space=sflag, size = 0x8, scoped, tag = 'scoped memory for tpu_custom_call.1']
    #allocation4 [shape = 's32[2]{0}', space=sflag, size = 0x8, scoped, tag = 'scoped memory for tpu_custom_call.1']
    #allocation5 [shape = 'u8[32768]{0}', space=vmem, size = 0x8000, scoped, tag = 'input window, operand 1, single buffered']
    #allocation6 [shape = 's32[1]{0}', space=sflag, size = 0x4, scoped, tag = 'scoped memory for tpu_custom_call.1']
    #allocation7 [shape = 'u8[16384]{0}', space=vmem, size = 0x4000, scoped, tag = 'input window, operand 2']
    #allocation8 [shape = 'u8[16384]{0}', space=vmem, size = 0x4000, scoped, tag = 'output window, operand 0']
    %8 = vsyncpa [#allocation3], 0
    %9 = vsyncpa [#allocation6], 0
    %10 = vsyncpa [#allocation4], 0
    %s11 = scalar_lea.sflag [#allocation4], 1
    %12 = vsyncpa %s11, 0
    loop: start=0, step=1, limit=4
    $region2: #{tpu_custom_call.1} parent=1 // loop_pre_header
      _
    $region3: #{tpu_custom_call.1} parent=1 // loop_header
      %s14 = sphi 0, %s18
      %p15 = scmp.ge.s32.totalorder %s14, 4
      %s22 = sphi 0, %s22
      %s24 = sphi 0, %s22
      %s25 = sphi 0, %s24
      %s39 = sphi 0, %s25
      %s43 = sphi 0, %s43
      %s45 = sphi 0, %s43
      %s46 = sphi 0, %s45
      %s60 = sphi 0, %s46
      %s66 = sphi 0, %s68
      %s69 = sphi 0, %s66
      %s70 = sphi 0, %s69
      %s86 = sphi 0, %s70
      %s92 = sphi 0, %s94
      %s95 = sphi 0, %s92
      %s96 = sphi 0, %s95
      %s112 = sphi 0, %s96
    $region4: #{tpu_custom_call.1} parent=1 // loop_header_branch
      %17 = sbr.rel (%p15) target = $region8
    $region5: #{tpu_custom_call.1} parent=1 // loop_body
      %s19 = ssub.s32 %s14, 1
      %s20 = ssub.s32 %s14, 2
      %s21 = sadd.s32 %s14, 1
      %s23 = sadd.s32 %s22, 1
      %p26 = scmp.eq.s32.totalorder %s14, 1
      %p27 = scmp.ne.s32.totalorder %s22, %s24
      %p28 = scmp.eq.s32.totalorder %s14, 0
      %p29 = por %p27, %p28
      %p30 = scmp.ne.s32.totalorder %s22, %s24
      %p31 = scmp.eq.s32.totalorder %s19, 1
      %p32 = por %p30, %p31
      %p33 = scmp.ne.s32.totalorder %s24, %s25
      %p34 = scmp.eq.s32.totalorder %s19, 0
      %p35 = por %p33, %p34
      %p36 = scmp.ne.s32.totalorder %s24, %s25
      %p37 = scmp.eq.s32.totalorder %s20, 1
      %p38 = por %p36, %p37
      %p40 = scmp.ne.s32.totalorder %s25, %s39
      %p41 = scmp.eq.s32.totalorder %s20, 0
      %p42 = por %p40, %p41
      %s44 = sadd.s32 %s43, 1
      %p47 = scmp.eq.s32.totalorder %s14, 1
      %p48 = scmp.ne.s32.totalorder %s43, %s45
      %p49 = scmp.eq.s32.totalorder %s14, 0
      %p50 = por %p48, %p49
      %p51 = scmp.ne.s32.totalorder %s43, %s45
      %p52 = scmp.eq.s32.totalorder %s19, 1
      %p53 = por %p51, %p52
      %p54 = scmp.ne.s32.totalorder %s45, %s46
      %p55 = scmp.eq.s32.totalorder %s19, 0
      %p56 = por %p54, %p55
      %p57 = scmp.ne.s32.totalorder %s45, %s46
      %p58 = scmp.eq.s32.totalorder %s20, 1
      %p59 = por %p57, %p58
      %p61 = scmp.ne.s32.totalorder %s46, %s60
      %p62 = scmp.eq.s32.totalorder %s20, 0
      %p63 = por %p61, %p62
      %s64 = ssub.s32 %s14, %s21
      %p65 = scmp.eq.s32.totalorder %s64, 0
      %s67 = sadd.s32 %s66, 1
      %s68 = scalar_select %p65, %s66, %s67
      %p71 = pneg %p65
      %p72 = scmp.eq.s32.totalorder %s14, 1
      %p73 = por %p71, %p72
      %p74 = scmp.ne.s32.totalorder %s66, %s69
      %p75 = scmp.eq.s32.totalorder %s14, 0
      %p76 = por %p74, %p75
      %p77 = scmp.ne.s32.totalorder %s66, %s69
      %p78 = scmp.eq.s32.totalorder %s19, 1
      %p79 = por %p77, %p78
      %p80 = scmp.ne.s32.totalorder %s69, %s70
      %p81 = scmp.eq.s32.totalorder %s19, 0
      %p82 = por %p80, %p81
      %p83 = scmp.ne.s32.totalorder %s69, %s70
      %p84 = scmp.eq.s32.totalorder %s20, 1
      %p85 = por %p83, %p84
      %p87 = scmp.ne.s32.totalorder %s70, %s86
      %p88 = scmp.eq.s32.totalorder %s20, 0
      %p89 = por %p87, %p88
      %s90 = ssub.s32 %s14, %s21
      %p91 = scmp.eq.s32.totalorder %s90, 0
      %s93 = sadd.s32 %s92, 1
      %s94 = scalar_select %p91, %s92, %s93
      %p97 = pneg %p91
      %p98 = scmp.eq.s32.totalorder %s14, 1
      %p99 = por %p97, %p98
      %p100 = scmp.ne.s32.totalorder %s92, %s95
      %p101 = scmp.eq.s32.totalorder %s14, 0
      %p102 = por %p100, %p101
      %p103 = scmp.ne.s32.totalorder %s92, %s95
      %p104 = scmp.eq.s32.totalorder %s19, 1
      %p105 = por %p103, %p104
      %p106 = scmp.ne.s32.totalorder %s95, %s96
      %p107 = scmp.eq.s32.totalorder %s19, 0
      %p108 = por %p106, %p107
      %p109 = scmp.ne.s32.totalorder %s95, %s96
      %p110 = scmp.eq.s32.totalorder %s20, 1
      %p111 = por %p109, %p110
      %p113 = scmp.ne.s32.totalorder %s96, %s112
      %p114 = scmp.eq.s32.totalorder %s20, 0
      %p115 = por %p113, %p114
      %p116 = scmp.le.s32.totalorder 1, %s14
      %p117 = scmp.lt.s32.totalorder %s14, 3
      %p118 = pnand %p116, %p117
      %p119 = pneg %p118
      // Predicated region
      $region9: #{tpu_custom_call.1} parent=5 // pred_check
        _
      $region10: #{tpu_custom_call.1} parent=5 // pred_check_branch
        %121 = sbr.rel (%p118) target = $region12
      $region11: #{tpu_custom_call.1} parent=5 // pred_region
        %s122 = ssub.s32 %s14, 1
        // Predicated region
        $region13: #{tpu_custom_call.1} parent=11 // pred_check
          %p123 = pneg %p35
        $region14: #{tpu_custom_call.1} parent=11 // pred_check_branch
          %125 = sbr.rel (%p123) target = $region16
        $region15: #{tpu_custom_call.1} parent=11 // pred_region
          %s127 = ssub.s32 128, 128
          %128 = vsyncadd [#allocation3], %s127
          %s129 = sshll.u32 [#allocation2], 4
          %s130 = int_to_ptr.vmem [resolvable:$true] %s129
          %135 = dma.hbm_to_vmem [thread:$0]  %s0, 128, %s130, [#allocation3], 64, 64, 4
        $region16: #{tpu_custom_call.1} parent=11 // pred_fallthru
          _
        // Predicated region
        $region17: #{tpu_custom_call.1} parent=11 // pred_check
          %p136 = pneg %p56
        $region18: #{tpu_custom_call.1} parent=11 // pred_check_branch
          %138 = sbr.rel (%p136) target = $region20
        $region19: #{tpu_custom_call.1} parent=11 // pred_region
          %s140 = ssub.s32 1024, 1024
          %141 = vsyncadd [#allocation6], %s140
          %s142 = sshll.u32 [#allocation5], 4
          %s143 = int_to_ptr.vmem [resolvable:$true] %s142
          %148 = dma.hbm_to_vmem [thread:$0]  %s1, 1024, %s143, [#allocation6], 64, 64, 4
        $region20: #{tpu_custom_call.1} parent=11 // pred_fallthru
          _
      $region12: #{tpu_custom_call.1} parent=5 // pred_fallthru
        _
      %p149 = scmp.lt.s32.totalorder %s14, 2
      // Predicated region
      $region21: #{tpu_custom_call.1} parent=5 // pred_check
        %p150 = pneg %p149
      $region22: #{tpu_custom_call.1} parent=5 // pred_check_branch
        %152 = sbr.rel (%p150) target = $region24
      $region23: #{tpu_custom_call.1} parent=5 // pred_region
        // Predicated region
        $region25: #{tpu_custom_call.1} parent=23 // pred_check
          %p153 = pneg %p76
        $region26: #{tpu_custom_call.1} parent=23 // pred_check_branch
          %155 = sbr.rel (%p153) target = $region28
        $region27: #{tpu_custom_call.1} parent=23 // pred_region
          %s156 = sand.u32 %s14, 1
          %s157 = scalar_lea.sflag [#allocation3], %s156
          %s158 = sand.u32 %s66, 1
          %s159 = smul.addr %s158, 16
          %s160 = scalar_lea.vmem [#allocation7], %s159
          %s162 = ssub.s32 256, 256
          %163 = vsyncadd %s157, %s162
          %s164 = smul.addr %s14, 2
          %s165 = smul.addr %s164, 128
          %s166 = scalar_lea.hbm %s2, %s165
          %s167 = sshll.u32 %s160, 4
          %s168 = int_to_ptr.vmem [resolvable:$true] %s167
          %173 = dma.hbm_to_vmem [thread:$0]  %s166, 256, %s168, %s157, 128, 128, 8
        $region28: #{tpu_custom_call.1} parent=23 // pred_fallthru
          _
      $region24: #{tpu_custom_call.1} parent=5 // pred_fallthru
        _
      %p174 = scmp.le.s32.totalorder 1, %s14
      %p175 = scmp.lt.s32.totalorder %s14, 3
      %p176 = pnand %p174, %p175
      %p177 = pneg %p176
      // Predicated region
      $region29: #{tpu_custom_call.1} parent=5 // pred_check
        _
      $region30: #{tpu_custom_call.1} parent=5 // pred_check_branch
        %179 = sbr.rel (%p176) target = $region32
      $region31: #{tpu_custom_call.1} parent=5 // pred_region
        %s180 = ssub.s32 %s14, 1
        // Predicated region
        $region33: #{tpu_custom_call.1} parent=31 // pred_check
          %p181 = pneg %p35
        $region34: #{tpu_custom_call.1} parent=31 // pred_check_branch
          %183 = sbr.rel (%p181) target = $region36
        $region35: #{tpu_custom_call.1} parent=31 // pred_region
          %184 = dma.done [#allocation3], 128
        $region36: #{tpu_custom_call.1} parent=31 // pred_fallthru
          _
        // Predicated region
        $region37: #{tpu_custom_call.1} parent=31 // pred_check
          %p185 = pneg %p56
        $region38: #{tpu_custom_call.1} parent=31 // pred_check_branch
          %187 = sbr.rel (%p185) target = $region40
        $region39: #{tpu_custom_call.1} parent=31 // pred_region
          %188 = dma.done [#allocation6], 1024
        $region40: #{tpu_custom_call.1} parent=31 // pred_fallthru
          _
        %s189 = sand.u32 %s19, 1
        %s190 = scalar_lea.sflag [#allocation3], %s189
        %s191 = sand.u32 %s69, 1
        %s192 = smul.addr %s191, 16
        %s193 = scalar_lea.vmem [#allocation7], %s192
        // Predicated region
        $region41: #{tpu_custom_call.1} parent=31 // pred_check
          %p194 = pneg %p82
        $region42: #{tpu_custom_call.1} parent=31 // pred_check_branch
          %196 = sbr.rel (%p194) target = $region44
        $region43: #{tpu_custom_call.1} parent=31 // pred_region
          %197 = dma.done %s190, 256
        $region44: #{tpu_custom_call.1} parent=31 // pred_fallthru
          _
        %p198 = pneg %p35
        %p199 = pneg %p32
        %p200 = pneg %p56
        %p201 = pneg %p53
        %s202 = sand.u32 %s19, 1
        %s203 = scalar_lea.sflag [#allocation3], %s202
        %s204 = sand.u32 %s69, 1
        %s205 = smul.addr %s204, 16
        %s206 = scalar_lea.vmem [#allocation7], %s205
        %p207 = pneg %p82
        %p208 = pneg %p79
        %p209 = pneg %p108
        %p210 = pneg %p105
        %s211 = sand.u32 %s95, 1
        %s212 = scalar_lea.sflag [#allocation4], %s211
        %s213 = sand.u32 %s95, 1
        %s214 = smul.addr %s213, 16
        %s215 = scalar_lea.vmem [#allocation8], %s214
        %v217 = vld [vmem:[#allocation5] sm:$0xf]
        %v218 = vld [vmem:[#allocation5 + $0x4] sm:$0xf]
        %v219 = vld [vmem:[#allocation5 + $0x8] sm:$0xf]
        %v220 = vld [vmem:[#allocation5 + $0xc] sm:$0xf]
        %v221 = vld [vmem:[#allocation5 + $0x10] sm:$0xf]
        %v222 = vld [vmem:[#allocation5 + $0x14] sm:$0xf]
        %v223 = vld [vmem:[#allocation5 + $0x18] sm:$0xf]
        %v224 = vld [vmem:[#allocation5 + $0x1c] sm:$0xf]
        %v225 = vld [vmem:[#allocation5 + $0x20] sm:$0xf]
        %v226 = vld [vmem:[#allocation5 + $0x24] sm:$0xf]
        %v227 = vld [vmem:[#allocation5 + $0x28] sm:$0xf]
        %v228 = vld [vmem:[#allocation5 + $0x2c] sm:$0xf]
        %v229 = vld [vmem:[#allocation5 + $0x30] sm:$0xf]
        %v230 = vld [vmem:[#allocation5 + $0x34] sm:$0xf]
        %v231 = vld [vmem:[#allocation5 + $0x38] sm:$0xf]
        %v232 = vld [vmem:[#allocation5 + $0x3c] sm:$0xf]
        %v233 = vld [vmem:[#allocation2] sm:$0xf]
        %v234 = vld [vmem:[#allocation2 + $0x4] sm:$0xf]
        %v235 = vld [vmem:[%s193] sm:$0xff]
        %v236 = vld [vmem:[%s193 + $0x8] sm:$0xff]
        %v237 = vpack.c.bf16 %v236, %v235
        %v254 = vunpack.c.l.b16 %v217
        %v255 = vunpack.c.l.b16 %v218
        %v256 = vunpack.c.l.b16 %v219
        %v257 = vunpack.c.l.b16 %v220
        %v258 = vunpack.c.l.b16 %v221
        %v259 = vunpack.c.l.b16 %v222
        %v260 = vunpack.c.l.b16 %v223
        %v261 = vunpack.c.l.b16 %v224
        %v262 = vunpack.c.l.b16 %v225
        %v263 = vunpack.c.l.b16 %v226
        %v264 = vunpack.c.l.b16 %v227
        %v265 = vunpack.c.l.b16 %v228
        %v266 = vunpack.c.l.b16 %v229
        %v267 = vunpack.c.l.b16 %v230
        %v268 = vunpack.c.l.b16 %v231
        %v269 = vunpack.c.l.b16 %v232
        %v270 = vpack.c.b16 %v255, %v254
        %v271 = vpack.c.b16 %v257, %v256
        %v272 = vpack.c.b16 %v259, %v258
        %v273 = vpack.c.b16 %v261, %v260
        %v274 = vpack.c.b16 %v263, %v262
        %v275 = vpack.c.b16 %v265, %v264
        %v276 = vpack.c.b16 %v267, %v266
        %v277 = vpack.c.b16 %v269, %v268
        %286 = vmatprep.subr.bf16.mxu0 0
        %287 = vmatpush1.bf16.msra.mxu0 %v270
        %288 = vmatprep.subr.bf16.mxu0 0
        %289 = vmatpush1.bf16.msra.mxu0 %v271
        %290 = vmatprep.subr.bf16.mxu0 0
        %291 = vmatpush1.bf16.msra.mxu0 %v272
        %292 = vmatprep.subr.bf16.mxu0 0
        %293 = vmatpush1.bf16.msra.mxu0 %v273
        %294 = vmatprep.subr.bf16.mxu0 0
        %295 = vmatpush1.bf16.msra.mxu0 %v274
        %296 = vmatprep.subr.bf16.mxu0 0
        %297 = vmatpush1.bf16.msra.mxu0 %v275
        %298 = vmatprep.subr.bf16.mxu0 0
        %299 = vmatpush1.bf16.msra.mxu0 %v276
        %300 = vmatprep.subr.bf16.mxu0 0
        %301 = vmatpush1.bf16.msra.mxu0 %v277
        %302 = vmatprep.subr.bf16.mxu0 0
        %303 = vmatpush1.bf16.msra.mxu0 0
        %304 = vmatprep.subr.bf16.mxu0 0
        %305 = vmatpush1.bf16.msra.mxu0 0
        %306 = vmatprep.subr.bf16.mxu0 0
        %307 = vmatpush1.bf16.msra.mxu0 0
        %308 = vmatprep.subr.bf16.mxu0 0
        %309 = vmatpush1.bf16.msra.mxu0 0
        %310 = vmatprep.subr.bf16.mxu0 0
        %311 = vmatpush1.bf16.msra.mxu0 0
        %312 = vmatprep.subr.bf16.mxu0 0
        %313 = vmatpush1.bf16.msra.mxu0 0
        %314 = vmatprep.subr.bf16.mxu0 0
        %315 = vmatpush1.bf16.msra.mxu0 0
        %316 = vmatprep.subr.bf16.mxu0 0
        %317 = vmatpush1.bf16.msra.mxu0 0
        %318 = vmatprep.mubr.bf16.mxu0 0
        %319 = vmatmul.mubr.bf16.gmra.mrb[0].mxu0 %v237
        %v320 = vpop.f32.mrb[0].mxu0
        %v321 = vadd.f32 0.0, %v320
        %v322 = vpop.f32.mrb[0].mxu0
        %v323 = vpop.f32.mrb[0].mxu0
        %v324 = vadd.f32 0.0, %v323
        %v325 = vpop.f32.mrb[0].mxu0
        %326 = vdwg.mxu0
        %v327 = vpack.c.bf16 %v324, %v321
        %v330 = vunpack.c.l.b16 %v233
        %v331 = vunpack.c.l.b16 %v234
        %v332 = vpack.c.b16 %v331, %v330
        %vm333 = vcmask 130048
        %v335 = vsel %vm333, %v332, 0
        %337 = vmatprep.subr.bf16.mxu0 0
        %338 = vmatpush1.bf16.msra.mxu0 %v327
        %339 = vmatprep.subr.bf16.mxu0 0
        %340 = vmatpush1.bf16.msra.mxu0 0
        %341 = vmatprep.subr.bf16.mxu0 0
        %342 = vmatpush1.bf16.msra.mxu0 0
        %343 = vmatprep.subr.bf16.mxu0 0
        %344 = vmatpush1.bf16.msra.mxu0 0
        %345 = vmatprep.subr.bf16.mxu0 0
        %346 = vmatpush1.bf16.msra.mxu0 0
        %347 = vmatprep.subr.bf16.mxu0 0
        %348 = vmatpush1.bf16.msra.mxu0 0
        %349 = vmatprep.subr.bf16.mxu0 0
        %350 = vmatpush1.bf16.msra.mxu0 0
        %351 = vmatprep.subr.bf16.mxu0 0
        %352 = vmatpush1.bf16.msra.mxu0 0
        %353 = vmatprep.subr.bf16.mxu0 0
        %354 = vmatpush1.bf16.msra.mxu0 0
        %355 = vmatprep.subr.bf16.mxu0 0
        %356 = vmatpush1.bf16.msra.mxu0 0
        %357 = vmatprep.subr.bf16.mxu0 0
        %358 = vmatpush1.bf16.msra.mxu0 0
        %359 = vmatprep.subr.bf16.mxu0 0
        %360 = vmatpush1.bf16.msra.mxu0 0
        %361 = vmatprep.subr.bf16.mxu0 0
        %362 = vmatpush1.bf16.msra.mxu0 0
        %363 = vmatprep.subr.bf16.mxu0 0
        %364 = vmatpush1.bf16.msra.mxu0 0
        %365 = vmatprep.subr.bf16.mxu0 0
        %366 = vmatpush1.bf16.msra.mxu0 0
        %367 = vmatprep.subr.bf16.mxu0 0
        %368 = vmatpush1.bf16.msra.mxu0 0
        %369 = vmatprep.mubr.bf16.mxu0 0
        %370 = vmatmul.mubr.bf16.gmra.mrb[0].mxu0 %v335
        %v371 = vpop.f32.mrb[0].mxu0
        %v372 = vadd.f32 0.0, %v371
        %v373 = vpop.f32.mrb[0].mxu0
        %v374 = vpop.f32.mrb[0].mxu0
        %v375 = vadd.f32 0.0, %v374
        %v376 = vpop.f32.mrb[0].mxu0
        %377 = vdwg.mxu0
        %378 = vst [vmem:[%s215] sm:$0xff] %v372
        %379 = vst [vmem:[%s215 + $0x8] sm:$0xff] %v375
        %s380 = sand.u32 %s95, 1
        %s381 = scalar_lea.sflag [#allocation4], %s380
        %s382 = sand.u32 %s95, 1
        %s383 = smul.addr %s382, 16
        %s384 = scalar_lea.vmem [#allocation8], %s383
        // Predicated region
        $region45: #{tpu_custom_call.1} parent=31 // pred_check
          %p385 = pneg %p105
        $region46: #{tpu_custom_call.1} parent=31 // pred_check_branch
          %387 = sbr.rel (%p385) target = $region48
        $region47: #{tpu_custom_call.1} parent=31 // pred_region
          %s389 = ssub.s32 256, 256
          %390 = vsyncadd %s381, %s389
          %s391 = smul.addr %s19, 2
          %s392 = smul.addr %s391, 128
          %s393 = scalar_lea.hbm %s3, %s392
          %s394 = sshll.u32 %s384, 4
          %s395 = int_to_ptr.vmem [resolvable:$true] %s394
          %400 = dma.vmem_to_hbm [thread:$0]  %s395, 256, %s393, %s381, 128, 128, 8
        $region48: #{tpu_custom_call.1} parent=31 // pred_fallthru
          _
      $region32: #{tpu_custom_call.1} parent=5 // pred_fallthru
        _
      %p401 = scmp.le.s32.totalorder 2, %s14
      // Predicated region
      $region49: #{tpu_custom_call.1} parent=5 // pred_check
        %p402 = pneg %p401
      $region50: #{tpu_custom_call.1} parent=5 // pred_check_branch
        %404 = sbr.rel (%p402) target = $region52
      $region51: #{tpu_custom_call.1} parent=5 // pred_region
        %s405 = ssub.s32 %s14, 2
        // Predicated region
        $region53: #{tpu_custom_call.1} parent=51 // pred_check
          %p406 = pneg %p111
        $region54: #{tpu_custom_call.1} parent=51 // pred_check_branch
          %408 = sbr.rel (%p406) target = $region56
        $region55: #{tpu_custom_call.1} parent=51 // pred_region
          %s409 = sand.u32 %s96, 1
          %s410 = scalar_lea.sflag [#allocation4], %s409
          %s411 = sand.u32 %s96, 1
          %s412 = smul.addr %s411, 16
          %s413 = scalar_lea.vmem [#allocation8], %s412
          %414 = dma.done %s410, 256
        $region56: #{tpu_custom_call.1} parent=51 // pred_fallthru
          _
      $region52: #{tpu_custom_call.1} parent=5 // pred_fallthru
        _
    $region6: #{tpu_custom_call.1} parent=1 // loop_footer
      %s18 = sadd.s32 1, %s14
    $region7: #{tpu_custom_call.1} parent=1 // loop_footer_branch
      %13 = sbr.rel target = $region3
    $region8: #{tpu_custom_call.1} parent=1 // loop_exit
      _
    %415 = vsyncpa [#allocation3], 1
    %s416 = scalar_lea.sflag [#allocation3], 1
    %417 = vsyncpa %s416, 1
    %418 = vsyncpa [#allocation6], 1
    %419 = vsyncpa [#allocation4], 1
    %s420 = scalar_lea.sflag [#allocation4], 1
    %421 = vsyncpa %s420, 1

</llo_original>
